<compile_context>
chip_gen: v7x
topology: tpu7x:2x2x1
jax: 0.10.0
libtpu: 0.0.40
codegen_flags: <defaults>
</compile_context>

<pallas_src>
import numpy as np
import jax
import jax.numpy as jnp
from jax import lax
from jax.experimental import pallas as pl
from jax.experimental.pallas import tpu as pltpu

BLOCK_SIZE = 8        # block_size (max sequence length / causal-mask size)
N_EMBD = 16           # n_embd
HEAD_SIZE = 4         # head_size (n_embd // 4, as used by the surrounding model)
MASK_NEG = -1e30      # additive causal-mask bias (exp underflows to exactly 0)


# ---------------------------------------------------------------------------
# Pallas kernel: one batch element per grid step
# ---------------------------------------------------------------------------
def head_kernel(x_ref, wqkv_ref, o_ref):
    # x_ref: (1, T, C)   wqkv_ref: (C, 3*Hd) packed [Wq | Wk | Wv]   o_ref: (1, T, Hd)
    T, C = x_ref.shape[1], x_ref.shape[2]
    Hd = wqkv_ref.shape[1] // 3

    x = x_ref[0]                                             # (T, C) f32

    # Fused Q/K/V projection: one MXU matmul instead of three.
    qkv = jnp.dot(x, wqkv_ref[...],
                  preferred_element_type=jnp.float32)        # (T, 3*Hd)
    q = qkv[:, 0 * Hd:1 * Hd]
    k = qkv[:, 1 * Hd:2 * Hd]
    v = qkv[:, 2 * Hd:3 * Hd]

    # wei = q @ k^T * C**-0.5   (spec scales by full embed dim C, not head_size)
    wei = lax.dot_general(q, k, (((1,), (1,)), ((), ())),
                          preferred_element_type=jnp.float32)  # (T, T)
    wei = wei * (float(C) ** -0.5)

    # Causal mask as an additive bias (0 on/below diagonal, -1e30 above).
    row = lax.broadcasted_iota(jnp.int32, (T, T), 0)
    col = lax.broadcasted_iota(jnp.int32, (T, T), 1)
    wei = wei + jnp.where(row >= col, 0.0, MASK_NEG).astype(jnp.float32)

    # Softmax along the key axis (f32 throughout; reciprocal is exact).
    wei = wei - jnp.max(wei, axis=-1, keepdims=True)
    e = jnp.exp(wei)
    p = e * pl.reciprocal(jnp.sum(e, axis=-1, keepdims=True))

    # TODO(synk): nn.Dropout(p=0.0) is the identity; a nonzero-p training path
    # would need pltpu.prng_seed/prng_random_bits masking.

    o_ref[0] = jnp.dot(p, v, preferred_element_type=jnp.float32)  # (T, Hd)


# ---------------------------------------------------------------------------
# Wrapper
# ---------------------------------------------------------------------------
def head_forward(x, w_qkv):
    """x: (B, T, C) f32; w_qkv: (C, 3*Hd) packed [Wq | Wk | Wv] in (in, out) layout."""
    B, T, C = x.shape
    Hd = w_qkv.shape[1] // 3
    return pl.pallas_call(
        head_kernel,
        grid=(B,),
        in_specs=[
            pl.BlockSpec((1, T, C), lambda b: (b, 0, 0)),        # per-batch tile
            pl.BlockSpec((C, 3 * Hd), lambda b: (0, 0)),         # weights resident
        ],
        out_specs=pl.BlockSpec((1, T, Hd), lambda b: (b, 0, 0)),
        out_shape=jax.ShapeDtypeStruct((B, T, Hd), jnp.float32),
        compiler_params=pltpu.CompilerParams(
            dimension_semantics=("parallel",)),                  # megacore-friendly
    )(x, w_qkv)


# ---------------------------------------------------------------------------
# Deterministic parameter init (nn.Linear(n_embd, head_size, bias=False) x3)
# ---------------------------------------------------------------------------
def init_weights(key):
    bound = 1.0 / np.sqrt(N_EMBD)            # nn.Linear default init bound
    kq, kk, kv = jax.random.split(key, 3)
    wq = jax.random.uniform(kq, (N_EMBD, HEAD_SIZE), jnp.float32, -bound, bound)
    wk = jax.random.uniform(kk, (N_EMBD, HEAD_SIZE), jnp.float32, -bound, bound)
    wv = jax.random.uniform(kv, (N_EMBD, HEAD_SIZE), jnp.float32, -bound, bound)
    return wq, wk, wv


# ---------------------------------------------------------------------------
# Pure-JAX reference mirroring the PyTorch module (separate q/k/v matmuls,
# masked_fill(-inf) + softmax) to validate the fused-kernel refactor.
# ---------------------------------------------------------------------------
def reference_head(x, wq, wk, wv):
    B, T, C = x.shape
    q = jnp.einsum('btc,cd->btd', x, wq)
    k = jnp.einsum('btc,cd->btd', x, wk)
    v = jnp.einsum('btc,cd->btd', x, wv)
    wei = jnp.einsum('btd,bsd->bts', q, k) * (float(C) ** -0.5)
    mask = jnp.tril(jnp.ones((T, T), jnp.bool_))[None]
    wei = jnp.where(mask, wei, -jnp.inf)
    wei = wei - jnp.max(wei, axis=-1, keepdims=True)
    e = jnp.exp(wei)
    p = e / jnp.sum(e, axis=-1, keepdims=True)
    return jnp.einsum('bts,bsd->btd', p, v)


if __name__ == "__main__":
    root = jax.random.PRNGKey(0)
    k_x, k_w = jax.random.split(root)

    B, T, C = 2, BLOCK_SIZE, N_EMBD
    x = jax.random.normal(k_x, (B, T, C), jnp.float32)
    wq, wk, wv = init_weights(k_w)
    w_qkv = jnp.concatenate([wq, wk, wv], axis=1)        # (C, 3*Hd) packed slab

    out = jax.block_until_ready(head_forward(x, w_qkv))
    assert out.shape == (B, T, HEAD_SIZE) and out.dtype == jnp.float32

    ref = jax.block_until_ready(reference_head(x, wq, wk, wv))
    np.testing.assert_allclose(np.asarray(out), np.asarray(ref),
                               rtol=1e-4, atol=1e-5)
    print("KERNEL_OK")
</pallas_src>

<mosaic_0001>
module attributes {stable_mosaic.version = 11 : i64} {
  func.func @head_kernel(%arg0: i32, %arg1: memref<1x8x16xf32, #tpu.memory_space<vmem>>, %arg2: memref<16x12xf32, #tpu.memory_space<vmem>>, %arg3: memref<1x8x4xf32, #tpu.memory_space<vmem>>) attributes {dimension_semantics = [#tpu.dimension_semantics<parallel>], iteration_bounds = array<i64: 2>, scalar_prefetch = 0 : i64, scratch_operands = 0 : i64, tpu.core_type = #tpu.core_type<tc>, window_params = [{transform_indices = @transform_0, window_bounds = array<i64: 1, 8, 16>}, {pipeline_mode = #tpu.pipeline_mode<synchronous>, transform_indices = @transform_1, window_bounds = array<i64: 16, 12>}, {transform_indices = @transform_2, window_bounds = array<i64: 1, 8, 4>}]} {
    %c0 = arith.constant 0 : index
    %c0_0 = arith.constant 0 : index
    %c0_1 = arith.constant 0 : index
    %0 = vector.load %arg1[%c0, %c0_0, %c0_1] : memref<1x8x16xf32, #tpu.memory_space<vmem>>, vector<1x8x16xf32>
    %1 = vector.shape_cast %0 : vector<1x8x16xf32> to vector<8x16xf32>
    %c0_2 = arith.constant 0 : index
    %c0_3 = arith.constant 0 : index
    %2 = vector.load %arg2[%c0_2, %c0_3] : memref<16x12xf32, #tpu.memory_space<vmem>>, vector<16x12xf32>
    %cst = arith.constant dense<0.000000e+00> : vector<8x12xf32>
    %3 = tpu.matmul %1, %2, %cst {dimension_numbers = #tpu.dot_dimension_numbers<[1], [0], [0], [1], [0, 0, 1, 1], [], []>} : vector<8x16xf32>, vector<16x12xf32>, vector<8x12xf32> -> vector<8x12xf32>
    %4 = vector.extract_strided_slice %3 {offsets = [0, 0], sizes = [8, 4], strides = [1, 1]} : vector<8x12xf32> to vector<8x4xf32>
    %5 = vector.extract_strided_slice %3 {offsets = [0, 4], sizes = [8, 4], strides = [1, 1]} : vector<8x12xf32> to vector<8x4xf32>
    %6 = vector.extract_strided_slice %3 {offsets = [0, 8], sizes = [8, 4], strides = [1, 1]} : vector<8x12xf32> to vector<8x4xf32>
    %cst_4 = arith.constant dense<0.000000e+00> : vector<8x8xf32>
    %7 = tpu.matmul %4, %5, %cst_4 {dimension_numbers = #tpu.dot_dimension_numbers<[1], [1], [0], [0], [0, 0, 1, 0], [], []>} : vector<8x4xf32>, vector<8x4xf32>, vector<8x8xf32> -> vector<8x8xf32>
    %cst_5 = arith.constant 2.500000e-01 : f32
    %8 = vector.broadcast %cst_5 : f32 to vector<8x8xf32>
    %9 = arith.mulf %7, %8 : vector<8x8xf32>
    %10 = tpu.iota {dimensions = array<i32: 0>} : vector<8x8xi32>
    %11 = tpu.iota {dimensions = array<i32: 1>} : vector<8x8xi32>
    %12 = arith.cmpi sge, %10, %11 : vector<8x8xi32>
    %cst_6 = arith.constant 0.000000e+00 : f32
    %cst_7 = arith.constant -1.000000e+30 : f32
    %13 = vector.broadcast %cst_6 : f32 to vector<8x8xf32>
    %14 = vector.broadcast %cst_7 : f32 to vector<8x8xf32>
    %15 = arith.select %12, %13, %14 : vector<8x8xi1>, vector<8x8xf32>
    %16 = arith.addf %9, %15 : vector<8x8xf32>
    %cst_8 = arith.constant dense<0xFF800000> : vector<8xf32>
    %17 = vector.multi_reduction <maximumf>, %16, %cst_8 [1] : vector<8x8xf32> to vector<8xf32>
    %18 = vector.shape_cast %17 : vector<8xf32> to vector<8x1xf32>
    %19 = vector.broadcast %18 : vector<8x1xf32> to vector<8x8xf32>
    %20 = arith.subf %16, %19 : vector<8x8xf32>
    %21 = math.exp %20 : vector<8x8xf32>
    %cst_9 = arith.constant dense<0.000000e+00> : vector<8xf32>
    %22 = vector.multi_reduction <add>, %21, %cst_9 [1] : vector<8x8xf32> to vector<8xf32>
    %23 = vector.shape_cast %22 : vector<8xf32> to vector<8x1xf32>
    %24 = tpu.reciprocal %23 : vector<8x1xf32> -> vector<8x1xf32>
    %25 = vector.broadcast %24 : vector<8x1xf32> to vector<8x8xf32>
    %26 = arith.mulf %21, %25 : vector<8x8xf32>
    %cst_10 = arith.constant dense<0.000000e+00> : vector<8x4xf32>
    %27 = tpu.matmul %26, %6, %cst_10 {dimension_numbers = #tpu.dot_dimension_numbers<[1], [0], [0], [1], [0, 0, 1, 1], [], []>} : vector<8x8xf32>, vector<8x4xf32>, vector<8x4xf32> -> vector<8x4xf32>
    %c0_11 = arith.constant 0 : index
    %c0_12 = arith.constant 0 : index
    %c0_13 = arith.constant 0 : index
    %28 = vector.load %arg3[%c0_11, %c0_12, %c0_13] : memref<1x8x4xf32, #tpu.memory_space<vmem>>, vector<1x8x4xf32>
    %29 = vector.shape_cast %28 : vector<1x8x4xf32> to vector<8x4xf32>
    %30 = vector.shape_cast %27 : vector<8x4xf32> to vector<1x8x4xf32>
    tpu.vector_store %arg3[%c0_11, %c0_12, %c0_13], %30 {strides = array<i32>} : memref<1x8x4xf32, #tpu.memory_space<vmem>>, vector<1x8x4xf32>,
    return
  }
  func.func @transform_0(%arg0: i32) -> (i32, i32, i32) {
    %c0_i32 = arith.constant 0 : i32
    %c0_i32_0 = arith.constant 0 : i32
    %c0_i32_1 = arith.constant 0 : i32
    return %arg0, %c0_i32, %c0_i32_0 : i32, i32, i32
  }
  func.func @transform_1(%arg0: i32) -> (i32, i32) {
    %c0_i32 = arith.constant 0 : i32
    %c0_i32_0 = arith.constant 0 : i32
    %c0_i32_1 = arith.constant 0 : i32
    return %c0_i32, %c0_i32_0 : i32, i32
  }
  func.func @transform_2(%arg0: i32) -> (i32, i32, i32) {
    %c0_i32 = arith.constant 0 : i32
    %c0_i32_0 = arith.constant 0 : i32
    %c0_i32_1 = arith.constant 0 : i32
    return %arg0, %c0_i32, %c0_i32_0 : i32, i32, i32
  }
}

</mosaic_0001>

<llo_original>
// kernel: tpu_custom_call.1
$region0: #{tpu_custom_call.1}
  #allocation0 [shape = 'u32[]', space=smem, size = 0x4, offset = 0x4, fixed_abs, tag = 'smem constant byte address 0x4 - core index']
  #allocation1 [shape = 'u32[144,128]{1,0:T(1,128)}', space=vmem, size = 0x12000, scoped, tag = 'internal scratch']
  %s0 = inlined_call_operand.hbm [shape: f32[2,8,16], index: 0, kind: input, shape index: {}]
  %s1 = inlined_call_operand.hbm [shape: f32[16,12], index: 1, kind: input, shape index: {}]
  %s2 = inlined_call_operand.vmem [shape: f32[2,8,4], index: 2, kind: output, shape index: {}]
  %s3 = sld [smem:[#allocation0]]
  $region49: #{tpu_custom_call.1} parent=0
    _
  %s5 = ssub.s32 1, %s3
  %s6 = scalar_select 0, %s5, %s3
  $region1: #{tpu_custom_call.1} parent=0
    #allocation2 [shape = 'u8[8192]{0}', space=vmem, size = 0x2000, scoped, tag = 'input window, operand 0']
    #allocation3 [shape = 's32[2]{0}', space=sflag, size = 0x8, scoped, tag = 'scoped memory for tpu_custom_call.1']
    #allocation4 [shape = 'u8[8192]{0}', space=vmem, size = 0x2000, scoped, tag = 'input window, operand 1, single buffered']
    #allocation5 [shape = 's32[1]{0}', space=sflag, size = 0x4, scoped, tag = 'scoped memory for tpu_custom_call.1']
    %7 = vsyncpa [#allocation3], 0
    %s8 = scalar_lea.sflag [#allocation3], 1
    %9 = vsyncpa %s8, 0
    %10 = vsyncpa [#allocation5], 0
    loop: start=0, step=1, limit=4
    $region2: #{tpu_custom_call.1} parent=1 // loop_pre_header
      _
    $region3: #{tpu_custom_call.1} parent=1 // loop_header
      %s12 = sphi 0, %s16
      %p13 = scmp.ge.s32.totalorder %s12, 4
      %s22 = sphi 0, %s24
      %s25 = sphi 0, %s22
      %s26 = sphi 0, %s25
      %s42 = sphi 0, %s26
      %s46 = sphi 0, %s46
      %s48 = sphi 0, %s46
      %s49 = sphi 0, %s48
      %s63 = sphi 0, %s49
      %s69 = sphi 0, %s71
      %s72 = sphi 0, %s69
      %s73 = sphi 0, %s72
      %s89 = sphi 0, %s73
    $region4: #{tpu_custom_call.1} parent=1 // loop_header_branch
      %15 = sbr.rel (%p13) target = $region8
    $region5: #{tpu_custom_call.1} parent=1 // loop_body
      %s17 = ssub.s32 %s12, 1
      %s18 = ssub.s32 %s12, 2
      %s19 = sadd.s32 %s12, 1
      %s20 = ssub.s32 %s12, %s19
      %p21 = scmp.eq.s32.totalorder %s20, 0
      %s23 = sadd.s32 %s22, 1
      %s24 = scalar_select %p21, %s22, %s23
      %p27 = pneg %p21
      %p28 = scmp.eq.s32.totalorder %s12, 1
      %p29 = por %p27, %p28
      %p30 = scmp.ne.s32.totalorder %s22, %s25
      %p31 = scmp.eq.s32.totalorder %s12, 0
      %p32 = por %p30, %p31
      %p33 = scmp.ne.s32.totalorder %s22, %s25
      %p34 = scmp.eq.s32.totalorder %s17, 1
      %p35 = por %p33, %p34
      %p36 = scmp.ne.s32.totalorder %s25, %s26
      %p37 = scmp.eq.s32.totalorder %s17, 0
      %p38 = por %p36, %p37
      %p39 = scmp.ne.s32.totalorder %s25, %s26
      %p40 = scmp.eq.s32.totalorder %s18, 1
      %p41 = por %p39, %p40
      %p43 = scmp.ne.s32.totalorder %s26, %s42
      %p44 = scmp.eq.s32.totalorder %s18, 0
      %p45 = por %p43, %p44
      %s47 = sadd.s32 %s46, 1
      %p50 = scmp.eq.s32.totalorder %s12, 1
      %p51 = scmp.ne.s32.totalorder %s46, %s48
      %p52 = scmp.eq.s32.totalorder %s12, 0
      %p53 = por %p51, %p52
      %p54 = scmp.ne.s32.totalorder %s46, %s48
      %p55 = scmp.eq.s32.totalorder %s17, 1
      %p56 = por %p54, %p55
      %p57 = scmp.ne.s32.totalorder %s48, %s49
      %p58 = scmp.eq.s32.totalorder %s17, 0
      %p59 = por %p57, %p58
      %p60 = scmp.ne.s32.totalorder %s48, %s49
      %p61 = scmp.eq.s32.totalorder %s18, 1
      %p62 = por %p60, %p61
      %p64 = scmp.ne.s32.totalorder %s49, %s63
      %p65 = scmp.eq.s32.totalorder %s18, 0
      %p66 = por %p64, %p65
      %s67 = ssub.s32 %s12, %s19
      %p68 = scmp.eq.s32.totalorder %s67, 0
      %s70 = sadd.s32 %s69, 1
      %s71 = scalar_select %p68, %s69, %s70
      %p74 = pneg %p68
      %p75 = scmp.eq.s32.totalorder %s12, 1
      %p76 = por %p74, %p75
      %p77 = scmp.ne.s32.totalorder %s69, %s72
      %p78 = scmp.eq.s32.totalorder %s12, 0
      %p79 = por %p77, %p78
      %p80 = scmp.ne.s32.totalorder %s69, %s72
      %p81 = scmp.eq.s32.totalorder %s17, 1
      %p82 = por %p80, %p81
      %p83 = scmp.ne.s32.totalorder %s72, %s73
      %p84 = scmp.eq.s32.totalorder %s17, 0
      %p85 = por %p83, %p84
      %p86 = scmp.ne.s32.totalorder %s72, %s73
      %p87 = scmp.eq.s32.totalorder %s18, 1
      %p88 = por %p86, %p87
      %p90 = scmp.ne.s32.totalorder %s73, %s89
      %p91 = scmp.eq.s32.totalorder %s18, 0
      %p92 = por %p90, %p91
      %p93 = scmp.le.s32.totalorder 1, %s12
      %p94 = scmp.lt.s32.totalorder %s12, 3
      %p95 = pnand %p93, %p94
      %p96 = pneg %p95
      // Predicated region
      $region9: #{tpu_custom_call.1} parent=5 // pred_check
        _
      $region10: #{tpu_custom_call.1} parent=5 // pred_check_branch
        %98 = sbr.rel (%p95) target = $region12
      $region11: #{tpu_custom_call.1} parent=5 // pred_region
        %s99 = ssub.s32 %s12, 1
        // Predicated region
        $region13: #{tpu_custom_call.1} parent=11 // pred_check
          %p100 = pneg %p59
        $region14: #{tpu_custom_call.1} parent=11 // pred_check_branch
          %102 = sbr.rel (%p100) target = $region16
        $region15: #{tpu_custom_call.1} parent=11 // pred_region
          %s104 = ssub.s32 256, 256
          %105 = vsyncadd [#allocation5], %s104
          %s106 = sshll.u32 [#allocation4], 4
          %s107 = int_to_ptr.vmem [resolvable:$true] %s106
          %112 = dma.hbm_to_vmem [thread:$0]  %s1, 256, %s107, [#allocation5], 128, 128, 8
        $region16: #{tpu_custom_call.1} parent=11 // pred_fallthru
          _
      $region12: #{tpu_custom_call.1} parent=5 // pred_fallthru
        _
      %p113 = scmp.lt.s32.totalorder %s12, 2
      // Predicated region
      $region17: #{tpu_custom_call.1} parent=5 // pred_check
        %p114 = pneg %p113
      $region18: #{tpu_custom_call.1} parent=5 // pred_check_branch
        %116 = sbr.rel (%p114) target = $region20
      $region19: #{tpu_custom_call.1} parent=5 // pred_region
        // Predicated region
        $region21: #{tpu_custom_call.1} parent=19 // pred_check
          %p117 = pneg %p32
        $region22: #{tpu_custom_call.1} parent=19 // pred_check_branch
          %119 = sbr.rel (%p117) target = $region24
        $region23: #{tpu_custom_call.1} parent=19 // pred_region
          %s120 = sand.u32 %s22, 1
          %s121 = scalar_lea.sflag [#allocation3], %s120
          %s122 = sand.u32 %s22, 1
          %s123 = smul.addr %s122, 8
          %s124 = scalar_lea.vmem [#allocation2], %s123
          %s126 = ssub.s32 128, 128
          %127 = vsyncadd %s121, %s126
          %s128 = smul.addr %s12, 128
          %s129 = scalar_lea.hbm %s0, %s128
          %s131 = sshll.u32 %s124, 4
          %s132 = int_to_ptr.vmem [resolvable:$true] %s131
          %134 = dma.hbm_to_vmem [thread:$0]  %s129, 128, %s132, %s121
        $region24: #{tpu_custom_call.1} parent=19 // pred_fallthru
          _
      $region20: #{tpu_custom_call.1} parent=5 // pred_fallthru
        _
      %p135 = scmp.le.s32.totalorder 1, %s12
      %p136 = scmp.lt.s32.totalorder %s12, 3
      %p137 = pnand %p135, %p136
      %p138 = pneg %p137
      // Predicated region
      $region25: #{tpu_custom_call.1} parent=5 // pred_check
        _
      $region26: #{tpu_custom_call.1} parent=5 // pred_check_branch
        %140 = sbr.rel (%p137) target = $region28
      $region27: #{tpu_custom_call.1} parent=5 // pred_region
        %s141 = ssub.s32 %s12, 1
        %s142 = sand.u32 %s25, 1
        %s143 = scalar_lea.sflag [#allocation3], %s142
        %s144 = sand.u32 %s25, 1
        %s145 = smul.addr %s144, 8
        %s146 = scalar_lea.vmem [#allocation2], %s145
        // Predicated region
        $region29: #{tpu_custom_call.1} parent=27 // pred_check
          %p147 = pneg %p38
        $region30: #{tpu_custom_call.1} parent=27 // pred_check_branch
          %149 = sbr.rel (%p147) target = $region32
        $region31: #{tpu_custom_call.1} parent=27 // pred_region
          %150 = dma.done %s143, 128
        $region32: #{tpu_custom_call.1} parent=27 // pred_fallthru
          _
        // Predicated region
        $region33: #{tpu_custom_call.1} parent=27 // pred_check
          %p151 = pneg %p59
        $region34: #{tpu_custom_call.1} parent=27 // pred_check_branch
          %153 = sbr.rel (%p151) target = $region36
        $region35: #{tpu_custom_call.1} parent=27 // pred_region
          %154 = dma.done [#allocation5], 256
        $region36: #{tpu_custom_call.1} parent=27 // pred_fallthru
          _
        %s155 = sand.u32 %s25, 1
        %s156 = scalar_lea.sflag [#allocation3], %s155
        %s157 = sand.u32 %s25, 1
        %s158 = smul.addr %s157, 8
        %s159 = scalar_lea.vmem [#allocation2], %s158
        %p160 = pneg %p38
        %p161 = pneg %p35
        %p162 = pneg %p59
        %p163 = pneg %p56
        %p164 = pneg %p85
        %p165 = pneg %p82
        %p166 = scmp.lt.s32.totalorder %s17, 1
        %s167 = scalar_select %p166, %s17, 1
        %s168 = smul.addr %s167, 8
        %s169 = scalar_lea.vmem %s2, %s168
        %p170 = scmp.lt.s32.totalorder %s17, 1
        %s171 = scalar_select %p170, %s17, 1
        %s172 = smul.addr %s171, 8
        %s173 = scalar_lea.vmem %s2, %s172
        %v174 = vld [vmem:[%s146] sm:$0xff]
        %v175 = vld [vmem:[#allocation4] sm:$0xff]
        %v176 = vld [vmem:[#allocation4 + $0x8] sm:$0xff]
        %vm177 = vcmask 130048
        %v179 = vsel %vm177, %v174, 0
        %181 = vmatprep.subr.mxu0 0.0
        %182 = vmatpush1.msra.mxu0 %v175
        %183 = vmatprep.subr.mxu0 0.0
        %184 = vmatpush1.msra.mxu0 %v176
        %185 = vmatprep.subr.mxu0 0.0
        %186 = vmatpush1.msra.mxu0 0.0
        %187 = vmatprep.subr.mxu0 0.0
        %188 = vmatpush1.msra.mxu0 0.0
        %189 = vmatprep.subr.mxu0 0.0
        %190 = vmatpush1.msra.mxu0 0.0
        %191 = vmatprep.subr.mxu0 0.0
        %192 = vmatpush1.msra.mxu0 0.0
        %193 = vmatprep.subr.mxu0 0.0
        %194 = vmatpush1.msra.mxu0 0.0
        %195 = vmatprep.subr.mxu0 0.0
        %196 = vmatpush1.msra.mxu0 0.0
        %197 = vmatprep.subr.mxu0 0.0
        %198 = vmatpush1.msra.mxu0 0.0
        %199 = vmatprep.subr.mxu0 0.0
        %200 = vmatpush1.msra.mxu0 0.0
        %201 = vmatprep.subr.mxu0 0.0
        %202 = vmatpush1.msra.mxu0 0.0
        %203 = vmatprep.subr.mxu0 0.0
        %204 = vmatpush1.msra.mxu0 0.0
        %205 = vmatprep.subr.mxu0 0.0
        %206 = vmatpush1.msra.mxu0 0.0
        %207 = vmatprep.subr.mxu0 0.0
        %208 = vmatpush1.msra.mxu0 0.0
        %209 = vmatprep.subr.mxu0 0.0
        %210 = vmatpush1.msra.mxu0 0.0
        %211 = vmatprep.subr.mxu0 0.0
        %212 = vmatpush1.msra.mxu0 0.0
        %213 = vmatprep.subr.mxu0 0.0
        %214 = vmatpush1.msra.mxu0 0.0
        %215 = vmatprep.subr.mxu0 0.0
        %216 = vmatpush1.msra.mxu0 0.0
        %217 = vmatprep.subr.mxu0 0.0
        %218 = vmatpush1.msra.mxu0 0.0
        %219 = vmatprep.subr.mxu0 0.0
        %220 = vmatpush1.msra.mxu0 0.0
        %221 = vmatprep.subr.mxu0 0.0
        %222 = vmatpush1.msra.mxu0 0.0
        %223 = vmatprep.subr.mxu0 0.0
        %224 = vmatpush1.msra.mxu0 0.0
        %225 = vmatprep.subr.mxu0 0.0
        %226 = vmatpush1.msra.mxu0 0.0
        %227 = vmatprep.subr.mxu0 0.0
        %228 = vmatpush1.msra.mxu0 0.0
        %229 = vmatprep.subr.mxu0 0.0
        %230 = vmatpush1.msra.mxu0 0.0
        %231 = vmatprep.subr.mxu0 0.0
        %232 = vmatpush1.msra.mxu0 0.0
        %233 = vmatprep.subr.mxu0 0.0
        %234 = vmatpush1.msra.mxu0 0.0
        %235 = vmatprep.subr.mxu0 0.0
        %236 = vmatpush1.msra.mxu0 0.0
        %237 = vmatprep.subr.mxu0 0.0
        %238 = vmatpush1.msra.mxu0 0.0
        %239 = vmatprep.subr.mxu0 0.0
        %240 = vmatpush1.msra.mxu0 0.0
        %241 = vmatprep.subr.mxu0 0.0
        %242 = vmatpush1.msra.mxu0 0.0
        %243 = vmatprep.subr.mxu0 0.0
        %244 = vmatpush1.msra.mxu0 0.0
        %245 = vmatprep.mubr.f32.mxu0 0.0
        %246 = vmatmul.mubr.f32.gmra.mrb[0].mxu0 %v179
        %v247 = vpop.f32.mrb[0].mxu0
        %v248 = vadd.f32 0.0, %v247
        %v249 = vpop.f32.mrb[0].mxu0
        %250 = vdwg.mxu0
        %252 = vrot.lane.b32.xlu0 %v248, 124
        %v253 = vpop.permute.xlu0 %252
        %vm254 = vcmask 31744
        %v255 = vsel %vm254, %v248, 0
        %v257 = vsel %vm254, %v253, 0
        %259 = vmatprep.subr.mxu0 0.0
        %260 = vmatpush1.xpose.msra.mxu0 %v257
        %261 = vmatprep.subr.mxu0 0.0
        %262 = vmatpush1.xpose.msra.mxu0 0.0
        %263 = vmatprep.subr.mxu0 0.0
        %264 = vmatpush1.xpose.msra.mxu0 0.0
        %265 = vmatprep.subr.mxu0 0.0
        %266 = vmatpush1.xpose.msra.mxu0 0.0
        %267 = vmatprep.subr.mxu0 0.0
        %268 = vmatpush1.xpose.msra.mxu0 0.0
        %269 = vmatprep.subr.mxu0 0.0
        %270 = vmatpush1.xpose.msra.mxu0 0.0
        %271 = vmatprep.subr.mxu0 0.0
        %272 = vmatpush1.xpose.msra.mxu0 0.0
        %273 = vmatprep.subr.mxu0 0.0
        %274 = vmatpush1.xpose.msra.mxu0 0.0
        %275 = vmatprep.subr.mxu0 0.0
        %276 = vmatpush1.xpose.msra.mxu0 0.0
        %277 = vmatprep.subr.mxu0 0.0
        %278 = vmatpush1.xpose.msra.mxu0 0.0
        %279 = vmatprep.subr.mxu0 0.0
        %280 = vmatpush1.xpose.msra.mxu0 0.0
        %281 = vmatprep.subr.mxu0 0.0
        %282 = vmatpush1.xpose.msra.mxu0 0.0
        %283 = vmatprep.subr.mxu0 0.0
        %284 = vmatpush1.xpose.msra.mxu0 0.0
        %285 = vmatprep.subr.mxu0 0.0
        %286 = vmatpush1.xpose.msra.mxu0 0.0
        %287 = vmatprep.subr.mxu0 0.0
        %288 = vmatpush1.xpose.msra.mxu0 0.0
        %289 = vmatprep.subr.mxu0 0.0
        %290 = vmatpush1.xpose.msra.mxu0 0.0
        %291 = vmatprep.subr.mxu0 0.0
        %292 = vmatpush1.xpose.msra.mxu0 0.0
        %293 = vmatprep.subr.mxu0 0.0
        %294 = vmatpush1.xpose.msra.mxu0 0.0
        %295 = vmatprep.subr.mxu0 0.0
        %296 = vmatpush1.xpose.msra.mxu0 0.0
        %297 = vmatprep.subr.mxu0 0.0
        %298 = vmatpush1.xpose.msra.mxu0 0.0
        %299 = vmatprep.subr.mxu0 0.0
        %300 = vmatpush1.xpose.msra.mxu0 0.0
        %301 = vmatprep.subr.mxu0 0.0
        %302 = vmatpush1.xpose.msra.mxu0 0.0
        %303 = vmatprep.subr.mxu0 0.0
        %304 = vmatpush1.xpose.msra.mxu0 0.0
        %305 = vmatprep.subr.mxu0 0.0
        %306 = vmatpush1.xpose.msra.mxu0 0.0
        %307 = vmatprep.subr.mxu0 0.0
        %308 = vmatpush1.xpose.msra.mxu0 0.0
        %309 = vmatprep.subr.mxu0 0.0
        %310 = vmatpush1.xpose.msra.mxu0 0.0
        %311 = vmatprep.subr.mxu0 0.0
        %312 = vmatpush1.xpose.msra.mxu0 0.0
        %313 = vmatprep.subr.mxu0 0.0
        %314 = vmatpush1.xpose.msra.mxu0 0.0
        %315 = vmatprep.subr.mxu0 0.0
        %316 = vmatpush1.xpose.msra.mxu0 0.0
        %317 = vmatprep.subr.mxu0 0.0
        %318 = vmatpush1.xpose.msra.mxu0 0.0
        %319 = vmatprep.subr.mxu0 0.0
        %320 = vmatpush1.xpose.msra.mxu0 0.0
        %321 = vmatprep.subr.mxu0 0.0
        %322 = vmatpush1.xpose.msra.mxu0 0.0
        %323 = vmatprep.mubr.f32.mxu0 0.0
        %324 = vmatmul.mubr.f32.gmra.mrb[0].mxu0 %v255
        %v325 = vpop.f32.mrb[0].mxu0
        %v326 = vadd.f32 0.0, %v325
        %v327 = vpop.f32.mrb[0].mxu0
        %328 = vdwg.mxu0
        %v329 = vmul.f32 %v326, 0.25
        %v330 = vlaneseq
        %v331 = vshrl.u32 %v330, 7
        %v332 = vlaneseq
        %v333 = vand.u32 %v332, 127
        %vm334 = vcmp.ge.s32.totalorder %v331, %v333
        %v335 = vsel %vm334, 0.0, -1e+30
        %v336 = vadd.f32 %v329, %v335
        %vm337 = vcmask 64512
        %v338 = vsel %vm337, %v336, -inf
        %339 = vmax.xlane.f32.xlu0 %v338
        %v340 = vpop.xlane.xlu0 %339
        %v341 = vsub.f32 %v336, %v340
        %v342 = vmul.f32 %v341, 1.442695
        %v343 = vpow.pop %v342
        %v344 = vsel %vm337, %v343, 0.0
        %345 = vadd.xlane.f32.xlu0 %v344
        %v346 = vpop.xlane.xlu0 %345
        %v347 = vrcp.pop %v346
        %v348 = vmul.f32 %v343, %v347
        %349 = vrot.lane.b32.xlu0 %v248, 120
        %v350 = vpop.permute.xlu0 %349
        %v353 = vsel %vm337, %v348, 0
        %355 = vmatprep.subr.mxu0 0.0
        %356 = vmatpush1.msra.mxu0 %v350
        %357 = vmatprep.subr.mxu0 0.0
        %358 = vmatpush1.msra.mxu0 0.0
        %359 = vmatprep.subr.mxu0 0.0
        %360 = vmatpush1.msra.mxu0 0.0
        %361 = vmatprep.subr.mxu0 0.0
        %362 = vmatpush1.msra.mxu0 0.0
        %363 = vmatprep.subr.mxu0 0.0
        %364 = vmatpush1.msra.mxu0 0.0
        %365 = vmatprep.subr.mxu0 0.0
        %366 = vmatpush1.msra.mxu0 0.0
        %367 = vmatprep.subr.mxu0 0.0
        %368 = vmatpush1.msra.mxu0 0.0
        %369 = vmatprep.subr.mxu0 0.0
        %370 = vmatpush1.msra.mxu0 0.0
        %371 = vmatprep.subr.mxu0 0.0
        %372 = vmatpush1.msra.mxu0 0.0
        %373 = vmatprep.subr.mxu0 0.0
        %374 = vmatpush1.msra.mxu0 0.0
        %375 = vmatprep.subr.mxu0 0.0
        %376 = vmatpush1.msra.mxu0 0.0
        %377 = vmatprep.subr.mxu0 0.0
        %378 = vmatpush1.msra.mxu0 0.0
        %379 = vmatprep.subr.mxu0 0.0
        %380 = vmatpush1.msra.mxu0 0.0
        %381 = vmatprep.subr.mxu0 0.0
        %382 = vmatpush1.msra.mxu0 0.0
        %383 = vmatprep.subr.mxu0 0.0
        %384 = vmatpush1.msra.mxu0 0.0
        %385 = vmatprep.subr.mxu0 0.0
        %386 = vmatpush1.msra.mxu0 0.0
        %387 = vmatprep.subr.mxu0 0.0
        %388 = vmatpush1.msra.mxu0 0.0
        %389 = vmatprep.subr.mxu0 0.0
        %390 = vmatpush1.msra.mxu0 0.0
        %391 = vmatprep.subr.mxu0 0.0
        %392 = vmatpush1.msra.mxu0 0.0
        %393 = vmatprep.subr.mxu0 0.0
        %394 = vmatpush1.msra.mxu0 0.0
        %395 = vmatprep.subr.mxu0 0.0
        %396 = vmatpush1.msra.mxu0 0.0
        %397 = vmatprep.subr.mxu0 0.0
        %398 = vmatpush1.msra.mxu0 0.0
        %399 = vmatprep.subr.mxu0 0.0
        %400 = vmatpush1.msra.mxu0 0.0
        %401 = vmatprep.subr.mxu0 0.0
        %402 = vmatpush1.msra.mxu0 0.0
        %403 = vmatprep.subr.mxu0 0.0
        %404 = vmatpush1.msra.mxu0 0.0
        %405 = vmatprep.subr.mxu0 0.0
        %406 = vmatpush1.msra.mxu0 0.0
        %407 = vmatprep.subr.mxu0 0.0
        %408 = vmatpush1.msra.mxu0 0.0
        %409 = vmatprep.subr.mxu0 0.0
        %410 = vmatpush1.msra.mxu0 0.0
        %411 = vmatprep.subr.mxu0 0.0
        %412 = vmatpush1.msra.mxu0 0.0
        %413 = vmatprep.subr.mxu0 0.0
        %414 = vmatpush1.msra.mxu0 0.0
        %415 = vmatprep.subr.mxu0 0.0
        %416 = vmatpush1.msra.mxu0 0.0
        %417 = vmatprep.subr.mxu0 0.0
        %418 = vmatpush1.msra.mxu0 0.0
        %419 = vmatprep.mubr.f32.mxu0 0.0
        %420 = vmatmul.mubr.f32.gmra.mrb[0].mxu0 %v353
        %v421 = vpop.f32.mrb[0].mxu0
        %v422 = vadd.f32 0.0, %v421
        %v423 = vpop.f32.mrb[0].mxu0
        %424 = vdwg.mxu0
        %425 = vst.msk [vmem:[%s173] sm:$0xff] %vm254, %v422
        %p426 = scmp.lt.s32.totalorder %s17, 1
        %s427 = scalar_select %p426, %s17, 1
        %s428 = smul.addr %s427, 8
        %s429 = scalar_lea.vmem %s2, %s428
        // Predicated region
        $region37: #{tpu_custom_call.1} parent=27 // pred_check
          %p430 = pneg %p82
        $region38: #{tpu_custom_call.1} parent=27 // pred_check_branch
          %432 = sbr.rel (%p430) target = $region40
        $region39: #{tpu_custom_call.1} parent=27 // pred_region
          _
        $region40: #{tpu_custom_call.1} parent=27 // pred_fallthru
          _
      $region28: #{tpu_custom_call.1} parent=5 // pred_fallthru
        _
      %p433 = scmp.le.s32.totalorder 2, %s12
      // Predicated region
      $region41: #{tpu_custom_call.1} parent=5 // pred_check
        %p434 = pneg %p433
      $region42: #{tpu_custom_call.1} parent=5 // pred_check_branch
        %436 = sbr.rel (%p434) target = $region44
      $region43: #{tpu_custom_call.1} parent=5 // pred_region
        %s437 = ssub.s32 %s12, 2
        // Predicated region
        $region45: #{tpu_custom_call.1} parent=43 // pred_check
          %p438 = pneg %p88
        $region46: #{tpu_custom_call.1} parent=43 // pred_check_branch
          %440 = sbr.rel (%p438) target = $region48
        $region47: #{tpu_custom_call.1} parent=43 // pred_region
          %p441 = scmp.lt.s32.totalorder %s18, 1
          %s442 = scalar_select %p441, %s18, 1
          %s443 = smul.addr %s442, 8
          %s444 = scalar_lea.vmem %s2, %s443
        $region48: #{tpu_custom_call.1} parent=43 // pred_fallthru
          _
      $region44: #{tpu_custom_call.1} parent=5 // pred_fallthru
        _
    $region6: #{tpu_custom_call.1} parent=1 // loop_footer
      %s16 = sadd.s32 1, %s12
    $region7: #{tpu_custom_call.1} parent=1 // loop_footer_branch
      %11 = sbr.rel target = $region3
    $region8: #{tpu_custom_call.1} parent=1 // loop_exit
      _
    %445 = vsyncpa [#allocation3], 1
    %s446 = scalar_lea.sflag [#allocation3], 1
    %447 = vsyncpa %s446, 1
    %448 = vsyncpa [#allocation5], 1

</llo_original>
